<compile_context>
chip_gen: v7x
topology: tpu7x:2x2x1
jax: 0.10.0
libtpu: 0.0.40
codegen_flags: <defaults>
</compile_context>

<pallas_src>
import jax
import jax.numpy as jnp
from jax.experimental import pallas as pl
from jax.experimental.pallas import tpu as pltpu


def _round_up(x, m):
    return ((x + m - 1) // m) * m


def _cdiv(a, b):
    return -(-a // b)


def _vmem_limit_bytes():
    # Budget roughly half of physical VMEM (v5e/v6e: 128 MiB -> 64 MiB,
    # v7x: 64 MiB -> 32 MiB) so pipelining headroom is preserved.
    try:
        cap = int(getattr(pltpu.get_tpu_info(), "vmem_capacity_bytes", 128 << 20))
    except Exception:  # pragma: no cover - info query unavailable
        cap = 128 << 20
    return int(min(cap // 2, 64 << 20))


# ----------------------------------------------------------------------------
# Pallas kernels: (M,N,K)-tiled matmul, bias + ReLU fused on the last K step.
#
# CORRECTNESS INVARIANT: the K axis is the innermost grid axis (axis 2) and is
# marked "arbitrary", and the output index_map is k-invariant, so the output
# block stays VMEM-resident across the whole reduction. Do NOT reorder the
# grid or mark K "parallel" without reintroducing a scratch accumulator.
# ----------------------------------------------------------------------------
def _linear_bias_relu_kernel_f32(x_ref, w_ref, b_ref, o_ref):
    k = pl.program_id(2)

    @pl.when(k == 0)
    def _():
        o_ref[...] = jnp.zeros_like(o_ref)

    # bf16 x bf16 on the MXU, f32 accumulate directly into the resident
    # output block (no scratch needed when the output dtype is f32).
    o_ref[...] += jnp.dot(
        x_ref[...].astype(jnp.bfloat16),
        w_ref[...],
        preferred_element_type=jnp.float32,
    )

    @pl.when(k == pl.num_programs(2) - 1)
    def _():
        o_ref[...] = jnp.maximum(o_ref[...] + b_ref[...], 0.0)


def _linear_bias_relu_kernel_cast(x_ref, w_ref, b_ref, o_ref, acc_ref):
    k = pl.program_id(2)

    @pl.when(k == 0)
    def _():
        acc_ref[...] = jnp.zeros_like(acc_ref)

    acc_ref[...] += jnp.dot(
        x_ref[...].astype(jnp.bfloat16),
        w_ref[...],
        preferred_element_type=jnp.float32,
    )

    @pl.when(k == pl.num_programs(2) - 1)
    def _():
        # Cast in-kernel -> half the output HBM writeback vs f32 + post-cast.
        o_ref[...] = jnp.maximum(acc_ref[...] + b_ref[...], 0.0).astype(o_ref.dtype)


def _pallas_linear_bias_relu(x_pad, w_pad_bf16, b_pad, *, tm, tn, tk, out_dtype):
    """x_pad: (M_pad, K_pad) f32, w_pad_bf16: (K_pad, N_pad) bf16,
    b_pad: (1, N_pad) f32 -> (M_pad, N_pad) out_dtype."""
    M_pad, K_pad = x_pad.shape
    Kw, N_pad = w_pad_bf16.shape
    assert K_pad == Kw
    grid = (M_pad // tm, N_pad // tn, K_pad // tk)

    # Weight spec: streamed along K; triple-buffer only when there are enough
    # K steps for DMA latency at k-step boundaries to be exposed.
    if grid[2] >= 3:
        w_spec = pl.BlockSpec((tk, tn), lambda i, j, k: (k, j),
                              pipeline_mode=pl.Buffered(3))
    else:
        w_spec = pl.BlockSpec((tk, tn), lambda i, j, k: (k, j))

    if out_dtype == jnp.float32:
        kernel = _linear_bias_relu_kernel_f32
        scratch = []
    else:
        kernel = _linear_bias_relu_kernel_cast
        scratch = [pltpu.VMEM((tm, tn), jnp.float32)]

    return pl.pallas_call(
        kernel,
        out_shape=jax.ShapeDtypeStruct((M_pad, N_pad), out_dtype),
        grid_spec=pltpu.PrefetchScalarGridSpec(
            num_scalar_prefetch=0,
            grid=grid,
            in_specs=[
                pl.BlockSpec((tm, tk), lambda i, j, k: (i, k)),  # activations
                w_spec,                                          # weights (bf16)
                pl.BlockSpec((1, tn), lambda i, j, k: (0, j)),   # bias (f32)
            ],
            # k-invariant output index_map: output block is the accumulator.
            out_specs=pl.BlockSpec((tm, tn), lambda i, j, k: (i, j)),
            scratch_shapes=scratch,
        ),
        compiler_params=pltpu.CompilerParams(
            # M/N independent (megacore-shardable on v7x; at tiny demo shapes
            # grid is (1,1,1) and one TC idles - unavoidable without wasteful
            # splitting), K is the reduction.
            dimension_semantics=("parallel", "parallel", "arbitrary"),
            vmem_limit_bytes=_vmem_limit_bytes(),
        ),
    )(x_pad, w_pad_bf16, b_pad)


# ----------------------------------------------------------------------------
# Synthetic stand-in for the opaque compiled bmodel network.
# ----------------------------------------------------------------------------
class _CompiledLinearReluNet:
    """flatten -> linear -> bias -> ReLU. Weights padded + cast to bf16 once
    at construction; the per-call path (pad x, pallas_call, slice) is jitted."""

    def __init__(self, w, b, out_dtype=jnp.float32,
                 tm_max=256, tn_max=512, tk_max=1024):
        K, N = w.shape
        self.K, self.N = int(K), int(N)
        self.out_dtype = out_dtype
        self.tm_max = tm_max

        # --- N tiling: keep tn = N when N <= 128 (no 128-pad of the weights).
        if N <= 128:
            tn, N_pad = N, N
        else:
            tn = min(_round_up(N, 128), tn_max)
            N_pad = _round_up(N, tn)

        # --- K tiling: divisor-aligned tk so K-pad waste is ~zero.
        k128 = _round_up(K, 128)
        n_k = max(1, _cdiv(k128, tk_max))
        tk = _round_up(_cdiv(k128, n_k), 128)
        K_pad = _round_up(k128, tk)

        self._tn, self._tk = tn, tk
        self._N_pad, self._K_pad = N_pad, K_pad

        # Pad + cast the static params ONCE (not per forward call).
        w_p = w if (K_pad, N_pad) == (K, N) else jnp.pad(
            w, ((0, K_pad - K), (0, N_pad - N)))
        b_p = b if N_pad == N else jnp.pad(b, ((0, 0), (0, N_pad - N)))
        self._w = jnp.asarray(w_p, jnp.bfloat16)   # bf16 -> native MXU path
        self._b = jnp.asarray(b_p, jnp.float32)    # f32 bias, added post-acc

        self._fn = jax.jit(self._run)

    def _run(self, x_flat):
        M, K = x_flat.shape
        assert K == self.K, "contraction-dim mismatch"
        tm = min(_round_up(M, 8), self.tm_max)
        M_pad = _round_up(M, tm)
        x_p = x_flat
        if (M_pad, self._K_pad) != (M, K):
            # K must remain ZERO-padded (padded K contributes 0 to the sum);
            # padded M rows are garbage-free zeros and get sliced off below.
            x_p = jnp.pad(x_flat, ((0, M_pad - M), (0, self._K_pad - K)))
        out_p = _pallas_linear_bias_relu(
            x_p, self._w, self._b,
            tm=tm, tn=self._tn, tk=self._tk, out_dtype=self.out_dtype)
        if (M_pad, self._N_pad) != (M, self.N):
            out_p = out_p[:M, :self.N]
        return out_p

    def __call__(self, x_flat):
        return self._fn(x_flat)


# ----------------------------------------------------------------------------
# JAX re-implementation of the TpuMlirModule wrapper semantics.
# ----------------------------------------------------------------------------
class TpuMlirModuleJax:
    """Mirrors TpuMlirModule.forward() routing/reshape/cast/None-padding
    semantics; the opaque compiled net is the Pallas linear+bias+ReLU above."""

    def __init__(self,
                 in_tensor_name_to_idx_dict,
                 net_input_shapes,          # {name: shape the compiled net expects}
                 output_dtypes=None,        # list of 'float32' | 'float16' | 'int64'
                 output_shapes=(),
                 return_none_count=0,
                 params=None):
        # output_shapes = [[1] if i == [] else i for i in output_shapes]
        self.output_shapes = [[1] if list(s) == [] else list(s) for s in output_shapes]
        self.output_dtypes = output_dtypes
        self.in_tensor_name_to_idx_dict = in_tensor_name_to_idx_dict
        self.net_input_shapes = net_input_shapes
        self.return_none_count = return_none_count

        # If fp16 output is declared, cast inside the kernel epilogue instead
        # of a post-hoc full-output cast pass.
        net_out_dtype = jnp.float32
        if output_dtypes is not None and len(output_dtypes) > 0 \
                and output_dtypes[0] == 'float16':
            net_out_dtype = jnp.float16

        w, b = params
        self.net = _CompiledLinearReluNet(w, b, out_dtype=net_out_dtype)
        self.initialized = True

    def _check_initialized(self):
        if not self.initialized:
            raise RuntimeError('TpuMlirModule is not initialized.')

    def forward(self, *inputs):
        self._check_initialized()

        # --- ProcessInputs: route by name, reshape to the net's declared shape.
        new_inputs = []
        for name, net_shape in self.net_input_shapes.items():
            x = inputs[self.in_tensor_name_to_idx_dict[name]]
            if list(x.shape) != list(net_shape):
                x = jnp.reshape(x, tuple(net_shape))
            new_inputs.append(x)

        # --- TpuRuntime: run the (synthetic) compiled net's Pallas hot path.
        # TODO(synk): the real TpuMlirModule executes an arbitrary precompiled
        # bmodel via pyruntime_bm; that opaque runtime call has no Pallas
        # equivalent, so a representative linear+bias+ReLU net is used instead.
        raw_outputs = [self.net(new_inputs[0])]

        # --- ProcessOutputs: squeeze [1]-shaped outputs, cast dtypes, pad Nones.
        tpu_outputs = []
        for out in raw_outputs:
            if out.shape == (1,):
                out = out[0]
            tpu_outputs.append(out)

        if self.output_dtypes is not None:
            casted = []
            for out, dtype in zip(tpu_outputs, self.output_dtypes):
                if dtype == 'int64':
                    # torch .int() -> int32 truncating cast (matches original wrapper)
                    casted.append(out.astype(jnp.int32))
                elif dtype == 'float16':
                    casted.append(out if out.dtype == jnp.float16
                                  else out.astype(jnp.float16))
                else:
                    casted.append(out if out.dtype == jnp.float32
                                  else out.astype(jnp.float32))
            tpu_outputs = casted

        if self.return_none_count > 0:
            tpu_outputs.extend([None for _ in range(self.return_none_count)])

        if len(tpu_outputs) == 1:
            return tpu_outputs[0]
        return tuple(tpu_outputs)

    __call__ = forward


if __name__ == "__main__":
    # Small shapes consistent with an NCHW conv-net style input.
    B, C, H, W = 2, 4, 16, 16             # torch-side input: NCHW
    K = C * H * W                          # 1024 (flattened by the compiled net)
    N_OUT = 32

    key = jax.random.PRNGKey(0)
    kx, kw, kb = jax.random.split(key, 3)

    x = jax.random.normal(kx, (B, C, H, W), dtype=jnp.float32)
    w = jax.random.normal(kw, (K, N_OUT), dtype=jnp.float32) * 0.02
    b = jax.random.normal(kb, (1, N_OUT), dtype=jnp.float32) * 0.1

    module = TpuMlirModuleJax(
        in_tensor_name_to_idx_dict={"input_0": 0},
        net_input_shapes={"input_0": (B, K)},   # compiled net expects flattened input
        output_dtypes=['float32'],
        output_shapes=[[B, N_OUT]],
        return_none_count=1,                     # forward returns (out, None)
        params=(w, b),
    )

    out = module(x)
    result = jax.block_until_ready(out[0])       # tuple: (tensor, None)

    # Sanity check against a plain-JAX f32 reference of the synthetic net
    # (kernel uses a bf16 MXU path with f32 accumulation -> loose tolerance).
    ref = jnp.maximum(x.reshape(B, K) @ w + b, 0.0)
    assert result.shape == (B, N_OUT)
    assert result.dtype == jnp.float32
    assert out[1] is None
    assert jnp.allclose(result, ref, atol=2e-2, rtol=2e-2)

    print("KERNEL_OK")
</pallas_src>

<mosaic_0001>
module attributes {stable_mosaic.version = 11 : i64} {
  func.func @_linear_bias_relu_kernel_f32(%arg0: i32, %arg1: i32, %arg2: i32, %arg3: memref<8x1024xf32, #tpu.memory_space<vmem>>, %arg4: memref<1024x32xbf16, #tpu.memory_space<vmem>>, %arg5: memref<1x32xf32, #tpu.memory_space<vmem>>, %arg6: memref<8x32xf32, #tpu.memory_space<vmem>>) attributes {dimension_semantics = [#tpu.dimension_semantics<parallel>, #tpu.dimension_semantics<parallel>, #tpu.dimension_semantics<arbitrary>], iteration_bounds = array<i64: 1, 1, 1>, scalar_prefetch = 0 : i64, scratch_operands = 0 : i64, tpu.core_type = #tpu.core_type<tc>, window_params = [{transform_indices = @transform_0, window_bounds = array<i64: 8, 1024>}, {transform_indices = @transform_1, window_bounds = array<i64: 1024, 32>}, {transform_indices = @transform_2, window_bounds = array<i64: 1, 32>}, {transform_indices = @transform_3, window_bounds = array<i64: 8, 32>}]} {
    %c0_i32 = arith.constant 0 : i32
    %0 = arith.cmpi eq, %arg2, %c0_i32 : i32
    %1 = arith.extui %0 : i1 to i32
    %c0_i32_0 = arith.constant 0 : i32
    %2 = arith.cmpi ne, %1, %c0_i32_0 : i32
    scf.if %2 {
      %cst_10 = arith.constant 0.000000e+00 : f32
      %13 = vector.broadcast %cst_10 : f32 to vector<8x32xf32>
      %c0_11 = arith.constant 0 : index
      %c0_12 = arith.constant 0 : index
      %14 = vector.load %arg6[%c0_11, %c0_12] : memref<8x32xf32, #tpu.memory_space<vmem>>, vector<8x32xf32>
      tpu.vector_store %arg6[%c0_11, %c0_12], %13 {strides = array<i32>} : memref<8x32xf32, #tpu.memory_space<vmem>>, vector<8x32xf32>,
    } else {
    }
    %c0 = arith.constant 0 : index
    %c0_1 = arith.constant 0 : index
    %3 = vector.load %arg6[%c0, %c0_1] : memref<8x32xf32, #tpu.memory_space<vmem>>, vector<8x32xf32>
    %c0_2 = arith.constant 0 : index
    %c0_3 = arith.constant 0 : index
    %4 = vector.load %arg3[%c0_2, %c0_3] : memref<8x1024xf32, #tpu.memory_space<vmem>>, vector<8x1024xf32>
    %5 = arith.truncf %4 : vector<8x1024xf32> to vector<8x1024xbf16>
    %c0_4 = arith.constant 0 : index
    %c0_5 = arith.constant 0 : index
    %6 = vector.load %arg4[%c0_4, %c0_5] : memref<1024x32xbf16, #tpu.memory_space<vmem>>, vector<1024x32xbf16>
    %cst = arith.constant dense<0.000000e+00> : vector<8x32xf32>
    %7 = tpu.matmul %5, %6, %cst {dimension_numbers = #tpu.dot_dimension_numbers<[1], [0], [0], [1], [0, 0, 1, 1], [], []>} : vector<8x1024xbf16>, vector<1024x32xbf16>, vector<8x32xf32> -> vector<8x32xf32>
    %8 = arith.addf %3, %7 : vector<8x32xf32>
    %c0_6 = arith.constant 0 : index
    %c0_7 = arith.constant 0 : index
    %9 = vector.load %arg6[%c0_6, %c0_7] : memref<8x32xf32, #tpu.memory_space<vmem>>, vector<8x32xf32>
    tpu.vector_store %arg6[%c0_6, %c0_7], %8 {strides = array<i32>} : memref<8x32xf32, #tpu.memory_space<vmem>>, vector<8x32xf32>,
    %c0_i32_8 = arith.constant 0 : i32
    %10 = arith.cmpi eq, %arg2, %c0_i32_8 : i32
    %11 = arith.extui %10 : i1 to i32
    %c0_i32_9 = arith.constant 0 : i32
    %12 = arith.cmpi ne, %11, %c0_i32_9 : i32
    scf.if %12 {
      %c0_10 = arith.constant 0 : index
      %c0_11 = arith.constant 0 : index
      %13 = vector.load %arg6[%c0_10, %c0_11] : memref<8x32xf32, #tpu.memory_space<vmem>>, vector<8x32xf32>
      %c0_12 = arith.constant 0 : index
      %c0_13 = arith.constant 0 : index
      %14 = vector.load %arg5[%c0_12, %c0_13] : memref<1x32xf32, #tpu.memory_space<vmem>>, vector<1x32xf32>
      %15 = vector.broadcast %14 : vector<1x32xf32> to vector<8x32xf32>
      %16 = arith.addf %13, %15 : vector<8x32xf32>
      %cst_14 = arith.constant 0.000000e+00 : f32
      %17 = vector.broadcast %cst_14 : f32 to vector<8x32xf32>
      %18 = arith.maximumf %16, %17 : vector<8x32xf32>
      %c0_15 = arith.constant 0 : index
      %c0_16 = arith.constant 0 : index
      %19 = vector.load %arg6[%c0_15, %c0_16] : memref<8x32xf32, #tpu.memory_space<vmem>>, vector<8x32xf32>
      tpu.vector_store %arg6[%c0_15, %c0_16], %18 {strides = array<i32>} : memref<8x32xf32, #tpu.memory_space<vmem>>, vector<8x32xf32>,
    } else {
    }
    return
  }
  func.func @transform_0(%arg0: i32, %arg1: i32, %arg2: i32) -> (i32, i32) {
    %c0_i32 = arith.constant 0 : i32
    return %arg0, %arg2 : i32, i32
  }
  func.func @transform_1(%arg0: i32, %arg1: i32, %arg2: i32) -> (i32, i32) {
    %c0_i32 = arith.constant 0 : i32
    return %arg2, %arg1 : i32, i32
  }
  func.func @transform_2(%arg0: i32, %arg1: i32, %arg2: i32) -> (i32, i32) {
    %c0_i32 = arith.constant 0 : i32
    %c0_i32_0 = arith.constant 0 : i32
    return %c0_i32, %arg1 : i32, i32
  }
  func.func @transform_3(%arg0: i32, %arg1: i32, %arg2: i32) -> (i32, i32) {
    %c0_i32 = arith.constant 0 : i32
    return %arg0, %arg1 : i32, i32
  }
}

</mosaic_0001>

<llo_original>
// kernel: _run.1
$region0: #{_run.1}
  #allocation0 [shape = 'u32[]', space=smem, size = 0x4, offset = 0x4, fixed_abs, tag = 'smem constant byte address 0x4 - core index']
  #allocation1 [shape = 'u32[144,128]{1,0:T(1,128)}', space=vmem, size = 0x12000, scoped, tag = 'internal scratch']
  %s0 = inlined_call_operand.hbm [shape: f32[8,1024], index: 0, kind: input, shape index: {}]
  %s1 = inlined_call_operand.hbm [shape: bf16[1024,32], index: 1, kind: input, shape index: {}]
  %s2 = inlined_call_operand.hbm [shape: f32[1,32], index: 2, kind: input, shape index: {}]
  %s3 = inlined_call_operand.hbm [shape: f32[8,32], index: 3, kind: output, shape index: {}]
  %s4 = sld [smem:[#allocation0]]
  $region42: #{_run.1} parent=0
    _
  %s6 = ssub.s32 1, %s4
  %s7 = scalar_select 0, %s6, %s4
  $region1: #{_run.1} parent=0
    #allocation2 [shape = 'u8[32768]{0}', space=vmem, size = 0x8000, scoped, tag = 'input window, operand 0, single buffered']
    #allocation3 [shape = 's32[1]{0}', space=sflag, size = 0x4, scoped, tag = 'scoped memory for _run.1']
    #allocation4 [shape = 's32[1]{0}', space=sflag, size = 0x4, scoped, tag = 'scoped memory for _run.1']
    #allocation5 [shape = 'u8[262144]{0}', space=vmem, size = 0x40000, scoped, tag = 'input window, operand 1, single buffered']
    #allocation6 [shape = 's32[1]{0}', space=sflag, size = 0x4, scoped, tag = 'scoped memory for _run.1']
    #allocation7 [shape = 'u8[512]{0}', space=vmem, size = 0x400, scoped, tag = 'input window, operand 2, single buffered']
    #allocation8 [shape = 'u8[4096]{0}', space=vmem, size = 0x1000, scoped, tag = 'output window, operand 0, single buffered']
    %8 = vsyncpa [#allocation3], 0
    %9 = vsyncpa [#allocation6], 0
    %10 = vsyncpa [#allocation4], 0
    // Predicated region
    $region2: #{_run.1} parent=1 // pred_check
      _
    $region3: #{_run.1} parent=1 // pred_check_branch
      %12 = sbr.rel (0) target = $region5
    $region4: #{_run.1} parent=1 // pred_region
      %s14 = ssub.s32 1024, 1024
      %15 = vsyncadd [#allocation3], %s14
      %s17 = sshll.u32 [#allocation2], 4
      %s18 = int_to_ptr.vmem [resolvable:$true] %s17
      %20 = dma.hbm_to_vmem [thread:$0]  %s0, 1024, %s18, [#allocation3]
    $region5: #{_run.1} parent=1 // pred_fallthru
      _
    // Predicated region
    $region6: #{_run.1} parent=1 // pred_check
      _
    $region7: #{_run.1} parent=1 // pred_check_branch
      %22 = sbr.rel (0) target = $region9
    $region8: #{_run.1} parent=1 // pred_region
      %s24 = ssub.s32 8192, 8192
      %25 = vsyncadd [#allocation6], %s24
      %s26 = sshll.u32 [#allocation5], 4
      %s27 = int_to_ptr.vmem [resolvable:$true] %s26
      %32 = dma.hbm_to_vmem [thread:$0]  %s1, 8192, %s27, [#allocation6], 64, 64, 4
    $region9: #{_run.1} parent=1 // pred_fallthru
      _
    // Predicated region
    $region10: #{_run.1} parent=1 // pred_check
      _
    $region11: #{_run.1} parent=1 // pred_check_branch
      %34 = sbr.rel (0) target = $region13
    $region12: #{_run.1} parent=1 // pred_region
      %s36 = ssub.s32 16, 16
      %37 = vsyncadd [#allocation6], %s36
      %s39 = sshll.u32 [#allocation7], 4
      %s40 = int_to_ptr.vmem [resolvable:$true] %s39
      %42 = dma.hbm_to_vmem [thread:$0]  %s2, 16, %s40, [#allocation6]
    $region13: #{_run.1} parent=1 // pred_fallthru
      _
    // Predicated region
    $region14: #{_run.1} parent=1 // pred_check
      _
    $region15: #{_run.1} parent=1 // pred_check_branch
      %44 = sbr.rel (0) target = $region17
    $region16: #{_run.1} parent=1 // pred_region
      %45 = dma.done [#allocation3], 1024
    $region17: #{_run.1} parent=1 // pred_fallthru
      _
    // Predicated region
    $region18: #{_run.1} parent=1 // pred_check
      _
    $region19: #{_run.1} parent=1 // pred_check_branch
      %47 = sbr.rel (0) target = $region21
    $region20: #{_run.1} parent=1 // pred_region
      %48 = dma.done [#allocation6], 8192
    $region21: #{_run.1} parent=1 // pred_fallthru
      _
    // Predicated region
    $region22: #{_run.1} parent=1 // pred_check
      _
    $region23: #{_run.1} parent=1 // pred_check_branch
      %50 = sbr.rel (0) target = $region25
    $region24: #{_run.1} parent=1 // pred_region
      %51 = dma.done [#allocation6], 16
    $region25: #{_run.1} parent=1 // pred_fallthru
      _
    %p53 = scmp.eq.s32.totalorder 0, 0
    // Predicated region
    $region26: #{_run.1} parent=1 // pred_check
      %p54 = pneg %p53
    $region27: #{_run.1} parent=1 // pred_check_branch
      %56 = sbr.rel (%p54) target = $region29
    $region28: #{_run.1} parent=1 // pred_region
      %vm57 = vcmask 261120
      %58 = vst.msk [vmem:[#allocation8] sm:$0xff] %vm57, 0.0
    $region29: #{_run.1} parent=1 // pred_fallthru
      _
    %v59 = vld [vmem:[#allocation8] sm:$0xff]
    %v60 = vld [vmem:[#allocation2] sm:$0xff]
    %v61 = vld [vmem:[#allocation2 + $0x8] sm:$0xff]
    %v62 = vld [vmem:[#allocation2 + $0x10] sm:$0xff]
    %v63 = vld [vmem:[#allocation2 + $0x18] sm:$0xff]
    %v64 = vld [vmem:[#allocation2 + $0x20] sm:$0xff]
    %v65 = vld [vmem:[#allocation2 + $0x28] sm:$0xff]
    %v66 = vld [vmem:[#allocation2 + $0x30] sm:$0xff]
    %v67 = vld [vmem:[#allocation2 + $0x38] sm:$0xff]
    %v68 = vpack.c.bf16 %v60, %v60
    %v69 = vpack.c.bf16 %v61, %v61
    %v70 = vpack.c.bf16 %v62, %v62
    %v71 = vpack.c.bf16 %v63, %v63
    %v72 = vpack.c.bf16 %v64, %v64
    %v73 = vpack.c.bf16 %v65, %v65
    %v74 = vpack.c.bf16 %v66, %v66
    %v75 = vpack.c.bf16 %v67, %v67
    %v76 = vld [vmem:[#allocation5] sm:$0xf]
    %v77 = vld [vmem:[#allocation5 + $0x4] sm:$0xf]
    %v78 = vld [vmem:[#allocation5 + $0x8] sm:$0xf]
    %v79 = vld [vmem:[#allocation5 + $0xc] sm:$0xf]
    %v80 = vld [vmem:[#allocation5 + $0x10] sm:$0xf]
    %v81 = vld [vmem:[#allocation5 + $0x14] sm:$0xf]
    %v82 = vld [vmem:[#allocation5 + $0x18] sm:$0xf]
    %v83 = vld [vmem:[#allocation5 + $0x1c] sm:$0xf]
    %v84 = vld [vmem:[#allocation5 + $0x20] sm:$0xf]
    %v85 = vld [vmem:[#allocation5 + $0x24] sm:$0xf]
    %v86 = vld [vmem:[#allocation5 + $0x28] sm:$0xf]
    %v87 = vld [vmem:[#allocation5 + $0x2c] sm:$0xf]
    %v88 = vld [vmem:[#allocation5 + $0x30] sm:$0xf]
    %v89 = vld [vmem:[#allocation5 + $0x34] sm:$0xf]
    %v90 = vld [vmem:[#allocation5 + $0x38] sm:$0xf]
    %v91 = vld [vmem:[#allocation5 + $0x3c] sm:$0xf]
    %v92 = vld [vmem:[#allocation5 + $0x40] sm:$0xf]
    %v93 = vld [vmem:[#allocation5 + $0x44] sm:$0xf]
    %v94 = vld [vmem:[#allocation5 + $0x48] sm:$0xf]
    %v95 = vld [vmem:[#allocation5 + $0x4c] sm:$0xf]
    %v96 = vld [vmem:[#allocation5 + $0x50] sm:$0xf]
    %v97 = vld [vmem:[#allocation5 + $0x54] sm:$0xf]
    %v98 = vld [vmem:[#allocation5 + $0x58] sm:$0xf]
    %v99 = vld [vmem:[#allocation5 + $0x5c] sm:$0xf]
    %v100 = vld [vmem:[#allocation5 + $0x60] sm:$0xf]
    %v101 = vld [vmem:[#allocation5 + $0x64] sm:$0xf]
    %v102 = vld [vmem:[#allocation5 + $0x68] sm:$0xf]
    %v103 = vld [vmem:[#allocation5 + $0x6c] sm:$0xf]
    %v104 = vld [vmem:[#allocation5 + $0x70] sm:$0xf]
    %v105 = vld [vmem:[#allocation5 + $0x74] sm:$0xf]
    %v106 = vld [vmem:[#allocation5 + $0x78] sm:$0xf]
    %v107 = vld [vmem:[#allocation5 + $0x7c] sm:$0xf]
    %v108 = vld [vmem:[#allocation5 + $0x80] sm:$0xf]
    %v109 = vld [vmem:[#allocation5 + $0x84] sm:$0xf]
    %v110 = vld [vmem:[#allocation5 + $0x88] sm:$0xf]
    %v111 = vld [vmem:[#allocation5 + $0x8c] sm:$0xf]
    %v112 = vld [vmem:[#allocation5 + $0x90] sm:$0xf]
    %v113 = vld [vmem:[#allocation5 + $0x94] sm:$0xf]
    %v114 = vld [vmem:[#allocation5 + $0x98] sm:$0xf]
    %v115 = vld [vmem:[#allocation5 + $0x9c] sm:$0xf]
    %v116 = vld [vmem:[#allocation5 + $0xa0] sm:$0xf]
    %v117 = vld [vmem:[#allocation5 + $0xa4] sm:$0xf]
    %v118 = vld [vmem:[#allocation5 + $0xa8] sm:$0xf]
    %v119 = vld [vmem:[#allocation5 + $0xac] sm:$0xf]
    %v120 = vld [vmem:[#allocation5 + $0xb0] sm:$0xf]
    %v121 = vld [vmem:[#allocation5 + $0xb4] sm:$0xf]
    %v122 = vld [vmem:[#allocation5 + $0xb8] sm:$0xf]
    %v123 = vld [vmem:[#allocation5 + $0xbc] sm:$0xf]
    %v124 = vld [vmem:[#allocation5 + $0xc0] sm:$0xf]
    %v125 = vld [vmem:[#allocation5 + $0xc4] sm:$0xf]
    %v126 = vld [vmem:[#allocation5 + $0xc8] sm:$0xf]
    %v127 = vld [vmem:[#allocation5 + $0xcc] sm:$0xf]
    %v128 = vld [vmem:[#allocation5 + $0xd0] sm:$0xf]
    %v129 = vld [vmem:[#allocation5 + $0xd4] sm:$0xf]
    %v130 = vld [vmem:[#allocation5 + $0xd8] sm:$0xf]
    %v131 = vld [vmem:[#allocation5 + $0xdc] sm:$0xf]
    %v132 = vld [vmem:[#allocation5 + $0xe0] sm:$0xf]
    %v133 = vld [vmem:[#allocation5 + $0xe4] sm:$0xf]
    %v134 = vld [vmem:[#allocation5 + $0xe8] sm:$0xf]
    %v135 = vld [vmem:[#allocation5 + $0xec] sm:$0xf]
    %v136 = vld [vmem:[#allocation5 + $0xf0] sm:$0xf]
    %v137 = vld [vmem:[#allocation5 + $0xf4] sm:$0xf]
    %v138 = vld [vmem:[#allocation5 + $0xf8] sm:$0xf]
    %v139 = vld [vmem:[#allocation5 + $0xfc] sm:$0xf]
    %v140 = vld [vmem:[#allocation5 + $0x100] sm:$0xf]
    %v141 = vld [vmem:[#allocation5 + $0x104] sm:$0xf]
    %v142 = vld [vmem:[#allocation5 + $0x108] sm:$0xf]
    %v143 = vld [vmem:[#allocation5 + $0x10c] sm:$0xf]
    %v144 = vld [vmem:[#allocation5 + $0x110] sm:$0xf]
    %v145 = vld [vmem:[#allocation5 + $0x114] sm:$0xf]
    %v146 = vld [vmem:[#allocation5 + $0x118] sm:$0xf]
    %v147 = vld [vmem:[#allocation5 + $0x11c] sm:$0xf]
    %v148 = vld [vmem:[#allocation5 + $0x120] sm:$0xf]
    %v149 = vld [vmem:[#allocation5 + $0x124] sm:$0xf]
    %v150 = vld [vmem:[#allocation5 + $0x128] sm:$0xf]
    %v151 = vld [vmem:[#allocation5 + $0x12c] sm:$0xf]
    %v152 = vld [vmem:[#allocation5 + $0x130] sm:$0xf]
    %v153 = vld [vmem:[#allocation5 + $0x134] sm:$0xf]
    %v154 = vld [vmem:[#allocation5 + $0x138] sm:$0xf]
    %v155 = vld [vmem:[#allocation5 + $0x13c] sm:$0xf]
    %v156 = vld [vmem:[#allocation5 + $0x140] sm:$0xf]
    %v157 = vld [vmem:[#allocation5 + $0x144] sm:$0xf]
    %v158 = vld [vmem:[#allocation5 + $0x148] sm:$0xf]
    %v159 = vld [vmem:[#allocation5 + $0x14c] sm:$0xf]
    %v160 = vld [vmem:[#allocation5 + $0x150] sm:$0xf]
    %v161 = vld [vmem:[#allocation5 + $0x154] sm:$0xf]
    %v162 = vld [vmem:[#allocation5 + $0x158] sm:$0xf]
    %v163 = vld [vmem:[#allocation5 + $0x15c] sm:$0xf]
    %v164 = vld [vmem:[#allocation5 + $0x160] sm:$0xf]
    %v165 = vld [vmem:[#allocation5 + $0x164] sm:$0xf]
    %v166 = vld [vmem:[#allocation5 + $0x168] sm:$0xf]
    %v167 = vld [vmem:[#allocation5 + $0x16c] sm:$0xf]
    %v168 = vld [vmem:[#allocation5 + $0x170] sm:$0xf]
    %v169 = vld [vmem:[#allocation5 + $0x174] sm:$0xf]
    %v170 = vld [vmem:[#allocation5 + $0x178] sm:$0xf]
    %v171 = vld [vmem:[#allocation5 + $0x17c] sm:$0xf]
    %v172 = vld [vmem:[#allocation5 + $0x180] sm:$0xf]
    %v173 = vld [vmem:[#allocation5 + $0x184] sm:$0xf]
    %v174 = vld [vmem:[#allocation5 + $0x188] sm:$0xf]
    %v175 = vld [vmem:[#allocation5 + $0x18c] sm:$0xf]
    %v176 = vld [vmem:[#allocation5 + $0x190] sm:$0xf]
    %v177 = vld [vmem:[#allocation5 + $0x194] sm:$0xf]
    %v178 = vld [vmem:[#allocation5 + $0x198] sm:$0xf]
    %v179 = vld [vmem:[#allocation5 + $0x19c] sm:$0xf]
    %v180 = vld [vmem:[#allocation5 + $0x1a0] sm:$0xf]
    %v181 = vld [vmem:[#allocation5 + $0x1a4] sm:$0xf]
    %v182 = vld [vmem:[#allocation5 + $0x1a8] sm:$0xf]
    %v183 = vld [vmem:[#allocation5 + $0x1ac] sm:$0xf]
    %v184 = vld [vmem:[#allocation5 + $0x1b0] sm:$0xf]
    %v185 = vld [vmem:[#allocation5 + $0x1b4] sm:$0xf]
    %v186 = vld [vmem:[#allocation5 + $0x1b8] sm:$0xf]
    %v187 = vld [vmem:[#allocation5 + $0x1bc] sm:$0xf]
    %v188 = vld [vmem:[#allocation5 + $0x1c0] sm:$0xf]
    %v189 = vld [vmem:[#allocation5 + $0x1c4] sm:$0xf]
    %v190 = vld [vmem:[#allocation5 + $0x1c8] sm:$0xf]
    %v191 = vld [vmem:[#allocation5 + $0x1cc] sm:$0xf]
    %v192 = vld [vmem:[#allocation5 + $0x1d0] sm:$0xf]
    %v193 = vld [vmem:[#allocation5 + $0x1d4] sm:$0xf]
    %v194 = vld [vmem:[#allocation5 + $0x1d8] sm:$0xf]
    %v195 = vld [vmem:[#allocation5 + $0x1dc] sm:$0xf]
    %v196 = vld [vmem:[#allocation5 + $0x1e0] sm:$0xf]
    %v197 = vld [vmem:[#allocation5 + $0x1e4] sm:$0xf]
    %v198 = vld [vmem:[#allocation5 + $0x1e8] sm:$0xf]
    %v199 = vld [vmem:[#allocation5 + $0x1ec] sm:$0xf]
    %v200 = vld [vmem:[#allocation5 + $0x1f0] sm:$0xf]
    %v201 = vld [vmem:[#allocation5 + $0x1f4] sm:$0xf]
    %v202 = vld [vmem:[#allocation5 + $0x1f8] sm:$0xf]
    %v203 = vld [vmem:[#allocation5 + $0x1fc] sm:$0xf]
    %v332 = vunpack.c.l.b16 %v76
    %v333 = vunpack.c.l.b16 %v77
    %v334 = vunpack.c.l.b16 %v78
    %v335 = vunpack.c.l.b16 %v79
    %v336 = vunpack.c.l.b16 %v80
    %v337 = vunpack.c.l.b16 %v81
    %v338 = vunpack.c.l.b16 %v82
    %v339 = vunpack.c.l.b16 %v83
    %v340 = vunpack.c.l.b16 %v84
    %v341 = vunpack.c.l.b16 %v85
    %v342 = vunpack.c.l.b16 %v86
    %v343 = vunpack.c.l.b16 %v87
    %v344 = vunpack.c.l.b16 %v88
    %v345 = vunpack.c.l.b16 %v89
    %v346 = vunpack.c.l.b16 %v90
    %v347 = vunpack.c.l.b16 %v91
    %v348 = vunpack.c.l.b16 %v92
    %v349 = vunpack.c.l.b16 %v93
    %v350 = vunpack.c.l.b16 %v94
    %v351 = vunpack.c.l.b16 %v95
    %v352 = vunpack.c.l.b16 %v96
    %v353 = vunpack.c.l.b16 %v97
    %v354 = vunpack.c.l.b16 %v98
    %v355 = vunpack.c.l.b16 %v99
    %v356 = vunpack.c.l.b16 %v100
    %v357 = vunpack.c.l.b16 %v101
    %v358 = vunpack.c.l.b16 %v102
    %v359 = vunpack.c.l.b16 %v103
    %v360 = vunpack.c.l.b16 %v104
    %v361 = vunpack.c.l.b16 %v105
    %v362 = vunpack.c.l.b16 %v106
    %v363 = vunpack.c.l.b16 %v107
    %v364 = vunpack.c.l.b16 %v108
    %v365 = vunpack.c.l.b16 %v109
    %v366 = vunpack.c.l.b16 %v110
    %v367 = vunpack.c.l.b16 %v111
    %v368 = vunpack.c.l.b16 %v112
    %v369 = vunpack.c.l.b16 %v113
    %v370 = vunpack.c.l.b16 %v114
    %v371 = vunpack.c.l.b16 %v115
    %v372 = vunpack.c.l.b16 %v116
    %v373 = vunpack.c.l.b16 %v117
    %v374 = vunpack.c.l.b16 %v118
    %v375 = vunpack.c.l.b16 %v119
    %v376 = vunpack.c.l.b16 %v120
    %v377 = vunpack.c.l.b16 %v121
    %v378 = vunpack.c.l.b16 %v122
    %v379 = vunpack.c.l.b16 %v123
    %v380 = vunpack.c.l.b16 %v124
    %v381 = vunpack.c.l.b16 %v125
    %v382 = vunpack.c.l.b16 %v126
    %v383 = vunpack.c.l.b16 %v127
    %v384 = vunpack.c.l.b16 %v128
    %v385 = vunpack.c.l.b16 %v129
    %v386 = vunpack.c.l.b16 %v130
    %v387 = vunpack.c.l.b16 %v131
    %v388 = vunpack.c.l.b16 %v132
    %v389 = vunpack.c.l.b16 %v133
    %v390 = vunpack.c.l.b16 %v134
    %v391 = vunpack.c.l.b16 %v135
    %v392 = vunpack.c.l.b16 %v136
    %v393 = vunpack.c.l.b16 %v137
    %v394 = vunpack.c.l.b16 %v138
    %v395 = vunpack.c.l.b16 %v139
    %v396 = vunpack.c.l.b16 %v140
    %v397 = vunpack.c.l.b16 %v141
    %v398 = vunpack.c.l.b16 %v142
    %v399 = vunpack.c.l.b16 %v143
    %v400 = vunpack.c.l.b16 %v144
    %v401 = vunpack.c.l.b16 %v145
    %v402 = vunpack.c.l.b16 %v146
    %v403 = vunpack.c.l.b16 %v147
    %v404 = vunpack.c.l.b16 %v148
    %v405 = vunpack.c.l.b16 %v149
    %v406 = vunpack.c.l.b16 %v150
    %v407 = vunpack.c.l.b16 %v151
    %v408 = vunpack.c.l.b16 %v152
    %v409 = vunpack.c.l.b16 %v153
    %v410 = vunpack.c.l.b16 %v154
    %v411 = vunpack.c.l.b16 %v155
    %v412 = vunpack.c.l.b16 %v156
    %v413 = vunpack.c.l.b16 %v157
    %v414 = vunpack.c.l.b16 %v158
    %v415 = vunpack.c.l.b16 %v159
    %v416 = vunpack.c.l.b16 %v160
    %v417 = vunpack.c.l.b16 %v161
    %v418 = vunpack.c.l.b16 %v162
    %v419 = vunpack.c.l.b16 %v163
    %v420 = vunpack.c.l.b16 %v164
    %v421 = vunpack.c.l.b16 %v165
    %v422 = vunpack.c.l.b16 %v166
    %v423 = vunpack.c.l.b16 %v167
    %v424 = vunpack.c.l.b16 %v168
    %v425 = vunpack.c.l.b16 %v169
    %v426 = vunpack.c.l.b16 %v170
    %v427 = vunpack.c.l.b16 %v171
    %v428 = vunpack.c.l.b16 %v172
    %v429 = vunpack.c.l.b16 %v173
    %v430 = vunpack.c.l.b16 %v174
    %v431 = vunpack.c.l.b16 %v175
    %v432 = vunpack.c.l.b16 %v176
    %v433 = vunpack.c.l.b16 %v177
    %v434 = vunpack.c.l.b16 %v178
    %v435 = vunpack.c.l.b16 %v179
    %v436 = vunpack.c.l.b16 %v180
    %v437 = vunpack.c.l.b16 %v181
    %v438 = vunpack.c.l.b16 %v182
    %v439 = vunpack.c.l.b16 %v183
    %v440 = vunpack.c.l.b16 %v184
    %v441 = vunpack.c.l.b16 %v185
    %v442 = vunpack.c.l.b16 %v186
    %v443 = vunpack.c.l.b16 %v187
    %v444 = vunpack.c.l.b16 %v188
    %v445 = vunpack.c.l.b16 %v189
    %v446 = vunpack.c.l.b16 %v190
    %v447 = vunpack.c.l.b16 %v191
    %v448 = vunpack.c.l.b16 %v192
    %v449 = vunpack.c.l.b16 %v193
    %v450 = vunpack.c.l.b16 %v194
    %v451 = vunpack.c.l.b16 %v195
    %v452 = vunpack.c.l.b16 %v196
    %v453 = vunpack.c.l.b16 %v197
    %v454 = vunpack.c.l.b16 %v198
    %v455 = vunpack.c.l.b16 %v199
    %v456 = vunpack.c.l.b16 %v200
    %v457 = vunpack.c.l.b16 %v201
    %v458 = vunpack.c.l.b16 %v202
    %v459 = vunpack.c.l.b16 %v203
    %v460 = vpack.c.b16 %v333, %v332
    %v461 = vpack.c.b16 %v335, %v334
    %v462 = vpack.c.b16 %v337, %v336
    %v463 = vpack.c.b16 %v339, %v338
    %v464 = vpack.c.b16 %v341, %v340
    %v465 = vpack.c.b16 %v343, %v342
    %v466 = vpack.c.b16 %v345, %v344
    %v467 = vpack.c.b16 %v347, %v346
    %v468 = vpack.c.b16 %v349, %v348
    %v469 = vpack.c.b16 %v351, %v350
    %v470 = vpack.c.b16 %v353, %v352
    %v471 = vpack.c.b16 %v355, %v354
    %v472 = vpack.c.b16 %v357, %v356
    %v473 = vpack.c.b16 %v359, %v358
    %v474 = vpack.c.b16 %v361, %v360
    %v475 = vpack.c.b16 %v363, %v362
    %v476 = vpack.c.b16 %v365, %v364
    %v477 = vpack.c.b16 %v367, %v366
    %v478 = vpack.c.b16 %v369, %v368
    %v479 = vpack.c.b16 %v371, %v370
    %v480 = vpack.c.b16 %v373, %v372
    %v481 = vpack.c.b16 %v375, %v374
    %v482 = vpack.c.b16 %v377, %v376
    %v483 = vpack.c.b16 %v379, %v378
    %v484 = vpack.c.b16 %v381, %v380
    %v485 = vpack.c.b16 %v383, %v382
    %v486 = vpack.c.b16 %v385, %v384
    %v487 = vpack.c.b16 %v387, %v386
    %v488 = vpack.c.b16 %v389, %v388
    %v489 = vpack.c.b16 %v391, %v390
    %v490 = vpack.c.b16 %v393, %v392
    %v491 = vpack.c.b16 %v395, %v394
    %v492 = vpack.c.b16 %v397, %v396
    %v493 = vpack.c.b16 %v399, %v398
    %v494 = vpack.c.b16 %v401, %v400
    %v495 = vpack.c.b16 %v403, %v402
    %v496 = vpack.c.b16 %v405, %v404
    %v497 = vpack.c.b16 %v407, %v406
    %v498 = vpack.c.b16 %v409, %v408
    %v499 = vpack.c.b16 %v411, %v410
    %v500 = vpack.c.b16 %v413, %v412
    %v501 = vpack.c.b16 %v415, %v414
    %v502 = vpack.c.b16 %v417, %v416
    %v503 = vpack.c.b16 %v419, %v418
    %v504 = vpack.c.b16 %v421, %v420
    %v505 = vpack.c.b16 %v423, %v422
    %v506 = vpack.c.b16 %v425, %v424
    %v507 = vpack.c.b16 %v427, %v426
    %v508 = vpack.c.b16 %v429, %v428
    %v509 = vpack.c.b16 %v431, %v430
    %v510 = vpack.c.b16 %v433, %v432
    %v511 = vpack.c.b16 %v435, %v434
    %v512 = vpack.c.b16 %v437, %v436
    %v513 = vpack.c.b16 %v439, %v438
    %v514 = vpack.c.b16 %v441, %v440
    %v515 = vpack.c.b16 %v443, %v442
    %v516 = vpack.c.b16 %v445, %v444
    %v517 = vpack.c.b16 %v447, %v446
    %v518 = vpack.c.b16 %v449, %v448
    %v519 = vpack.c.b16 %v451, %v450
    %v520 = vpack.c.b16 %v453, %v452
    %v521 = vpack.c.b16 %v455, %v454
    %v522 = vpack.c.b16 %v457, %v456
    %v523 = vpack.c.b16 %v459, %v458
    %588 = vmatprep.subr.bf16.mxu0 0
    %589 = vmatpush1.bf16.msra.mxu0 %v460
    %590 = vmatprep.subr.bf16.mxu0 0
    %591 = vmatpush1.bf16.msra.mxu0 %v461
    %592 = vmatprep.subr.bf16.mxu0 0
    %593 = vmatpush1.bf16.msra.mxu0 %v462
    %594 = vmatprep.subr.bf16.mxu0 0
    %595 = vmatpush1.bf16.msra.mxu0 %v463
    %596 = vmatprep.subr.bf16.mxu0 0
    %597 = vmatpush1.bf16.msra.mxu0 %v464
    %598 = vmatprep.subr.bf16.mxu0 0
    %599 = vmatpush1.bf16.msra.mxu0 %v465
    %600 = vmatprep.subr.bf16.mxu0 0
    %601 = vmatpush1.bf16.msra.mxu0 %v466
    %602 = vmatprep.subr.bf16.mxu0 0
    %603 = vmatpush1.bf16.msra.mxu0 %v467
    %604 = vmatprep.subr.bf16.mxu0 0
    %605 = vmatpush1.bf16.msra.mxu0 %v468
    %606 = vmatprep.subr.bf16.mxu0 0
    %607 = vmatpush1.bf16.msra.mxu0 %v469
    %608 = vmatprep.subr.bf16.mxu0 0
    %609 = vmatpush1.bf16.msra.mxu0 %v470
    %610 = vmatprep.subr.bf16.mxu0 0
    %611 = vmatpush1.bf16.msra.mxu0 %v471
    %612 = vmatprep.subr.bf16.mxu0 0
    %613 = vmatpush1.bf16.msra.mxu0 %v472
    %614 = vmatprep.subr.bf16.mxu0 0
    %615 = vmatpush1.bf16.msra.mxu0 %v473
    %616 = vmatprep.subr.bf16.mxu0 0
    %617 = vmatpush1.bf16.msra.mxu0 %v474
    %618 = vmatprep.subr.bf16.mxu0 0
    %619 = vmatpush1.bf16.msra.mxu0 %v475
    %620 = vmatprep.mubr.bf16.mxu0 %v69
    %621 = vmatmul.mubr.bf16.gmra.mrb[0].mxu0 %v68
    %v622 = vpop.f32.mrb[0].mxu0
    %v623 = vadd.f32 0.0, %v622
    %v624 = vpop.f32.mrb[0].mxu0
    %v625 = vpop.f32.mrb[0].mxu0
    %v626 = vpop.f32.mrb[0].mxu0
    %627 = vdwg.mxu0
    %628 = vmatprep.subr.bf16.mxu0 0
    %629 = vmatpush1.bf16.msra.mxu0 %v476
    %630 = vmatprep.subr.bf16.mxu0 0
    %631 = vmatpush1.bf16.msra.mxu0 %v477
    %632 = vmatprep.subr.bf16.mxu0 0
    %633 = vmatpush1.bf16.msra.mxu0 %v478
    %634 = vmatprep.subr.bf16.mxu0 0
    %635 = vmatpush1.bf16.msra.mxu0 %v479
    %636 = vmatprep.subr.bf16.mxu0 0
    %637 = vmatpush1.bf16.msra.mxu0 %v480
    %638 = vmatprep.subr.bf16.mxu0 0
    %639 = vmatpush1.bf16.msra.mxu0 %v481
    %640 = vmatprep.subr.bf16.mxu0 0
    %641 = vmatpush1.bf16.msra.mxu0 %v482
    %642 = vmatprep.subr.bf16.mxu0 0
    %643 = vmatpush1.bf16.msra.mxu0 %v483
    %644 = vmatprep.subr.bf16.mxu0 0
    %645 = vmatpush1.bf16.msra.mxu0 %v484
    %646 = vmatprep.subr.bf16.mxu0 0
    %647 = vmatpush1.bf16.msra.mxu0 %v485
    %648 = vmatprep.subr.bf16.mxu0 0
    %649 = vmatpush1.bf16.msra.mxu0 %v486
    %650 = vmatprep.subr.bf16.mxu0 0
    %651 = vmatpush1.bf16.msra.mxu0 %v487
    %652 = vmatprep.subr.bf16.mxu0 0
    %653 = vmatpush1.bf16.msra.mxu0 %v488
    %654 = vmatprep.subr.bf16.mxu0 0
    %655 = vmatpush1.bf16.msra.mxu0 %v489
    %656 = vmatprep.subr.bf16.mxu0 0
    %657 = vmatpush1.bf16.msra.mxu0 %v490
    %658 = vmatprep.subr.bf16.mxu0 0
    %659 = vmatpush1.bf16.msra.mxu0 %v491
    %660 = vmatprep.mubr.bf16.mxu0 %v71
    %661 = vmatmul.mubr.bf16.gmra.mrb[0].mxu0 %v70
    %v662 = vpop.f32.mrb[0].mxu0
    %v663 = vadd.f32 %v623, %v662
    %v664 = vpop.f32.mrb[0].mxu0
    %v665 = vpop.f32.mrb[0].mxu0
    %v666 = vpop.f32.mrb[0].mxu0
    %667 = vdwg.mxu0
    %668 = vmatprep.subr.bf16.mxu0 0
    %669 = vmatpush1.bf16.msra.mxu0 %v492
    %670 = vmatprep.subr.bf16.mxu0 0
    %671 = vmatpush1.bf16.msra.mxu0 %v493
    %672 = vmatprep.subr.bf16.mxu0 0
    %673 = vmatpush1.bf16.msra.mxu0 %v494
    %674 = vmatprep.subr.bf16.mxu0 0
    %675 = vmatpush1.bf16.msra.mxu0 %v495
    %676 = vmatprep.subr.bf16.mxu0 0
    %677 = vmatpush1.bf16.msra.mxu0 %v496
    %678 = vmatprep.subr.bf16.mxu0 0
    %679 = vmatpush1.bf16.msra.mxu0 %v497
    %680 = vmatprep.subr.bf16.mxu0 0
    %681 = vmatpush1.bf16.msra.mxu0 %v498
    %682 = vmatprep.subr.bf16.mxu0 0
    %683 = vmatpush1.bf16.msra.mxu0 %v499
    %684 = vmatprep.subr.bf16.mxu0 0
    %685 = vmatpush1.bf16.msra.mxu0 %v500
    %686 = vmatprep.subr.bf16.mxu0 0
    %687 = vmatpush1.bf16.msra.mxu0 %v501
    %688 = vmatprep.subr.bf16.mxu0 0
    %689 = vmatpush1.bf16.msra.mxu0 %v502
    %690 = vmatprep.subr.bf16.mxu0 0
    %691 = vmatpush1.bf16.msra.mxu0 %v503
    %692 = vmatprep.subr.bf16.mxu0 0
    %693 = vmatpush1.bf16.msra.mxu0 %v504
    %694 = vmatprep.subr.bf16.mxu0 0
    %695 = vmatpush1.bf16.msra.mxu0 %v505
    %696 = vmatprep.subr.bf16.mxu0 0
    %697 = vmatpush1.bf16.msra.mxu0 %v506
    %698 = vmatprep.subr.bf16.mxu0 0
    %699 = vmatpush1.bf16.msra.mxu0 %v507
    %700 = vmatprep.mubr.bf16.mxu0 %v73
    %701 = vmatmul.mubr.bf16.gmra.mrb[0].mxu0 %v72
    %v702 = vpop.f32.mrb[0].mxu0
    %v703 = vadd.f32 %v663, %v702
    %v704 = vpop.f32.mrb[0].mxu0
    %v705 = vpop.f32.mrb[0].mxu0
    %v706 = vpop.f32.mrb[0].mxu0
    %707 = vdwg.mxu0
    %708 = vmatprep.subr.bf16.mxu0 0
    %709 = vmatpush1.bf16.msra.mxu0 %v508
    %710 = vmatprep.subr.bf16.mxu0 0
    %711 = vmatpush1.bf16.msra.mxu0 %v509
    %712 = vmatprep.subr.bf16.mxu0 0
    %713 = vmatpush1.bf16.msra.mxu0 %v510
    %714 = vmatprep.subr.bf16.mxu0 0
    %715 = vmatpush1.bf16.msra.mxu0 %v511
    %716 = vmatprep.subr.bf16.mxu0 0
    %717 = vmatpush1.bf16.msra.mxu0 %v512
    %718 = vmatprep.subr.bf16.mxu0 0
    %719 = vmatpush1.bf16.msra.mxu0 %v513
    %720 = vmatprep.subr.bf16.mxu0 0
    %721 = vmatpush1.bf16.msra.mxu0 %v514
    %722 = vmatprep.subr.bf16.mxu0 0
    %723 = vmatpush1.bf16.msra.mxu0 %v515
    %724 = vmatprep.subr.bf16.mxu0 0
    %725 = vmatpush1.bf16.msra.mxu0 %v516
    %726 = vmatprep.subr.bf16.mxu0 0
    %727 = vmatpush1.bf16.msra.mxu0 %v517
    %728 = vmatprep.subr.bf16.mxu0 0
    %729 = vmatpush1.bf16.msra.mxu0 %v518
    %730 = vmatprep.subr.bf16.mxu0 0
    %731 = vmatpush1.bf16.msra.mxu0 %v519
    %732 = vmatprep.subr.bf16.mxu0 0
    %733 = vmatpush1.bf16.msra.mxu0 %v520
    %734 = vmatprep.subr.bf16.mxu0 0
    %735 = vmatpush1.bf16.msra.mxu0 %v521
    %736 = vmatprep.subr.bf16.mxu0 0
    %737 = vmatpush1.bf16.msra.mxu0 %v522
    %738 = vmatprep.subr.bf16.mxu0 0
    %739 = vmatpush1.bf16.msra.mxu0 %v523
    %740 = vmatprep.mubr.bf16.mxu0 %v75
    %741 = vmatmul.mubr.bf16.gmra.mrb[0].mxu0 %v74
    %v742 = vpop.f32.mrb[0].mxu0
    %v743 = vadd.f32 %v703, %v742
    %v744 = vpop.f32.mrb[0].mxu0
    %v745 = vpop.f32.mrb[0].mxu0
    %v746 = vpop.f32.mrb[0].mxu0
    %747 = vdwg.mxu0
    %v748 = vadd.f32 %v59, %v743
    %vm749 = vcmask 261120
    %750 = vst.msk [vmem:[#allocation8] sm:$0xff] %vm749, %v748
    // Predicated region
    $region30: #{_run.1} parent=1 // pred_check
      %p751 = pneg %p53
    $region31: #{_run.1} parent=1 // pred_check_branch
      %753 = sbr.rel (%p751) target = $region33
    $region32: #{_run.1} parent=1 // pred_region
      %v754 = vld [vmem:[#allocation8] sm:$0xff]
      %v755 = vld [vmem:[#allocation7] sm:$0x1]
      %v757 = vlaneseq
      %v758 = vshrl.u32 %v757, 7
      %v759 = vsub.s32 0, %v758
      %v760 = vrot.slane %v755, %v759
      %v762 = vadd.f32 %v754, %v760
      %v763 = vmax.f32 %v762, 0.0
      %764 = vst.msk [vmem:[#allocation8] sm:$0xff] %vm749, %v763
    $region33: #{_run.1} parent=1 // pred_fallthru
      _
    // Predicated region
    $region34: #{_run.1} parent=1 // pred_check
      _
    $region35: #{_run.1} parent=1 // pred_check_branch
      %766 = sbr.rel (0) target = $region37
    $region36: #{_run.1} parent=1 // pred_region
      %s768 = ssub.s32 128, 128
      %769 = vsyncadd [#allocation4], %s768
      %s771 = sshll.u32 [#allocation8], 4
      %s772 = int_to_ptr.vmem [resolvable:$true] %s771
      %774 = dma.vmem_to_hbm [thread:$0]  %s772, 128, %s3, [#allocation4]
    $region37: #{_run.1} parent=1 // pred_fallthru
      _
    // Predicated region
    $region38: #{_run.1} parent=1 // pred_check
      _
    $region39: #{_run.1} parent=1 // pred_check_branch
      %776 = sbr.rel (0) target = $region41
    $region40: #{_run.1} parent=1 // pred_region
      %777 = dma.done [#allocation4], 128
    $region41: #{_run.1} parent=1 // pred_fallthru
      _
    %778 = vsyncpa [#allocation3], 1
    %779 = vsyncpa [#allocation6], 1
    %780 = vsyncpa [#allocation4], 1

</llo_original>
